<compile_context>
chip_gen: v5e
topology: v5e:2x2
jax: 0.10.0
libtpu: 0.0.40
codegen_flags: <defaults>
</compile_context>

<pallas_src>
import functools

import numpy as np
import jax
import jax.numpy as jnp
from jax.experimental import pallas as pl
from jax.experimental.pallas import tpu as pltpu  # noqa: F401  (TPU backend)

_OUT_PAD = 128   # lane-dense output slab width
_SUBLANE = 8     # f32 sublane multiple


# ---------------------------------------------------------------------------
# Fused Pallas kernel: merged LSTM(buggy)+LSTM(patch) recurrence + FC head
# ---------------------------------------------------------------------------
def _disc_kernel(x_ref, wih_ref, bih_ref, whh_ref,
                 w1_ref, b1_ref, gamma_ref, beta_ref,
                 w2_ref, b2_ref, out_ref, *, seq_len, batch, hidden):
    """Inputs (all f32):
      x_ref   : (T*B, 2E)  time-major [xb | xp] embedded rows
      wih_ref : (2E, 8H)   block-diag input->gate weights, cols [i_b,i_p,f_b,f_p,o_b,o_p,g_b,g_p]
      bih_ref : (1, 8H)    combined b_ih + b_hh, same column order
      whh_ref : (2H, 8H)   block-diag hidden->gate weights, same column order
      w1_ref  : (2H, H)    fc1 weight (transposed); rows match [hb | hp]
      b1/gamma/beta : (1, H)
      w2_ref  : (H, 128)   fc2 weight (transposed), zero-padded lanes
      b2_ref  : (1, 128)   fc2 bias, zero-padded lanes
      out_ref : (B, 128)   logits in lanes [:2]
    """
    T, B, H = seq_len, batch, hidden
    H2, H4, H6 = 2 * H, 4 * H, 6 * H

    whh = whh_ref[...]

    # ---- Hoisted block-diagonal input projection (one matmul per call) ----
    gx = (jnp.dot(x_ref[...], wih_ref[...], preferred_element_type=jnp.float32)
          + bih_ref[...])                               # (T*B, 8H)

    # ---- Merged recurrence, fully unrolled (T static & small) -------------
    h = jnp.zeros((B, H2), jnp.float32)                 # [hb | hp]
    c = jnp.zeros((B, H2), jnp.float32)                 # [cb | cp]
    for t in range(T):
        # static 8-row (sublane-tile aligned) slice; one dependent MXU push.
        g = gx[t * B:(t + 1) * B] + jnp.dot(h, whh,
                                            preferred_element_type=jnp.float32)
        s = jax.nn.sigmoid(g[:, :H6])                   # [i_b,i_p,f_b,f_p,o_b,o_p]
        gt = jnp.tanh(g[:, H6:])                        # [g_b,g_p]
        c = s[:, H2:H4] * c + s[:, :H2] * gt            # f*c + i*g   (both chains)
        h = s[:, H4:] * jnp.tanh(c)                     # o*tanh(c)   -> [hb | hp]

    # ---- FC head (Dropouts are identity at inference) ---------------------
    # concat(hb, hp) is already the lane layout of h -> single matmul.
    x = jnp.dot(h, w1_ref[...], preferred_element_type=jnp.float32) + b1_ref[...]
    mean = jnp.mean(x, axis=-1, keepdims=True)
    var = jnp.mean((x - mean) ** 2, axis=-1, keepdims=True)   # biased, like torch LN
    x = (x - mean) * jax.lax.rsqrt(var + 1e-5) * gamma_ref[...] + beta_ref[...]
    x = jnp.maximum(x, 0.0)
    out_ref[...] = (jnp.dot(x, w2_ref[...], preferred_element_type=jnp.float32)
                    + b2_ref[...])


# ---------------------------------------------------------------------------
# One-time weight preparation (outside jit; call once at load time)
# ---------------------------------------------------------------------------
def _merge_gate_weights(w_b, w_p):
    """PyTorch-layout (4H, Din) weights of both chains -> merged (2*Din, 8H).

    Output gate column order: [i_b, i_p, f_b, f_p, o_b, o_p, g_b, g_p], with a
    block-diagonal structure so [in_b | in_p] @ W produces both chains' gates.
    """
    h = w_b.shape[0] // 4
    din = w_b.shape[1]
    ib, fb, gb, ob = jnp.split(w_b.astype(jnp.float32), 4, axis=0)
    ip, fp, gp, op_ = jnp.split(w_p.astype(jnp.float32), 4, axis=0)
    z = jnp.zeros((h, din), jnp.float32)
    rows = [jnp.concatenate([ib, z], axis=1), jnp.concatenate([z, ip], axis=1),
            jnp.concatenate([fb, z], axis=1), jnp.concatenate([z, fp], axis=1),
            jnp.concatenate([ob, z], axis=1), jnp.concatenate([z, op_], axis=1),
            jnp.concatenate([gb, z], axis=1), jnp.concatenate([z, gp], axis=1)]
    return jnp.concatenate(rows, axis=0).T              # (2*Din, 8H)


def _merge_gate_bias(b_b, b_p):
    h = b_b.shape[0] // 4
    ib, fb, gb, ob = jnp.split(b_b.astype(jnp.float32), 4)
    ip, fp, gp, op_ = jnp.split(b_p.astype(jnp.float32), 4)
    return jnp.concatenate([ib, ip, fb, fp, ob, op_, gb, gp]).reshape(1, 8 * h)


def prepare_params(params):
    """Gate permute/merge, transposes and fc2 lane-padding, done once."""
    H = params["lstm_b_w_hh"].shape[1]
    out_dim = params["fc2_w"].shape[0]
    wih = _merge_gate_weights(params["lstm_b_w_ih"], params["lstm_p_w_ih"])   # (2E, 8H)
    whh = _merge_gate_weights(params["lstm_b_w_hh"], params["lstm_p_w_hh"])   # (2H, 8H)
    bih = _merge_gate_bias(params["lstm_b_b_ih"] + params["lstm_b_b_hh"],
                           params["lstm_p_b_ih"] + params["lstm_p_b_hh"])     # (1, 8H)
    w2_t = jnp.transpose(params["fc2_w"]).astype(jnp.float32)                 # (H, out_dim)
    return {
        "buggy_embedding": params["buggy_embedding"].astype(jnp.float32),
        "patch_embedding": params["patch_embedding"].astype(jnp.float32),
        "wih": wih, "whh": whh, "bih": bih,
        "w1": jnp.transpose(params["fc1_w"]).astype(jnp.float32),             # (2H, H)
        "b1": params["fc1_b"].reshape(1, H).astype(jnp.float32),
        "gamma": params["ln_gamma"].reshape(1, H).astype(jnp.float32),
        "beta": params["ln_beta"].reshape(1, H).astype(jnp.float32),
        "w2": jnp.pad(w2_t, ((0, 0), (0, _OUT_PAD - out_dim))),
        "b2": jnp.pad(params["fc2_b"].reshape(1, out_dim).astype(jnp.float32),
                      ((0, 0), (0, _OUT_PAD - out_dim))),
    }


# ---------------------------------------------------------------------------
# Jitted forward
# ---------------------------------------------------------------------------
@functools.partial(jax.jit, static_argnames=("out_dim",))
def discriminator_no_share_s(prep, buggy_input, patch_input, buggy_mask,
                             patch_mask, *, out_dim=2):
    # Masks are unused in the reference forward pass.
    del buggy_mask, patch_mask
    B, T = buggy_input.shape
    E = prep["buggy_embedding"].shape[1]
    H = prep["w1"].shape[1]
    B_pad = ((B + _SUBLANE - 1) // _SUBLANE) * _SUBLANE   # f32 sublane multiple

    # Pad batch with token 0 rows (sliced off at the end), fold the time-major
    # transpose into the gather, and flatten (T,B,2E)->(T*B,2E) at the XLA
    # boundary so the kernel never relayouts.
    ids_b = jnp.pad(buggy_input, ((0, B_pad - B), (0, 0)))
    ids_p = jnp.pad(patch_input, ((0, B_pad - B), (0, 0)))
    xb = jnp.take(prep["buggy_embedding"], ids_b.T, axis=0)     # (T, B_pad, E)
    xp = jnp.take(prep["patch_embedding"], ids_p.T, axis=0)     # (T, B_pad, E)
    # TODO(synk): at realistic T*B*E sizes, gather embedding rows in-kernel via
    # scalar-prefetched token ids instead of materializing activations in HBM.
    x_cat = jnp.concatenate([xb, xp], axis=-1).reshape(T * B_pad, 2 * E)

    # TODO(synk): at realistic batch sizes, add a batch-tiled grid with
    # dimension_semantics=("parallel",) so v7x's second TensorCore is used and
    # VMEM stays bounded; a single grid-less call is right at B_pad=8.
    out_pad = pl.pallas_call(
        functools.partial(_disc_kernel, seq_len=T, batch=B_pad, hidden=H),
        out_shape=jax.ShapeDtypeStruct((B_pad, _OUT_PAD), jnp.float32),
    )(x_cat, prep["wih"], prep["bih"], prep["whh"],
      prep["w1"], prep["b1"], prep["gamma"], prep["beta"],
      prep["w2"], prep["b2"])
    return out_pad[:B, :out_dim]


# ---------------------------------------------------------------------------
# Pure-JAX f32 reference (matches the PyTorch forward, inference mode)
# ---------------------------------------------------------------------------
def reference_forward(params, buggy_input, patch_input):
    def lstm_last_h(emb, ids, w_ih, w_hh, b_ih, b_hh):
        x = jnp.take(emb, ids, axis=0)                     # (B, T, E)
        B, T, _ = x.shape
        H = w_hh.shape[1]
        h = jnp.zeros((B, H), jnp.float32)
        c = jnp.zeros((B, H), jnp.float32)
        for t in range(T):
            g = x[:, t] @ w_ih.T + b_ih + h @ w_hh.T + b_hh
            i, f, gg, o = jnp.split(g, 4, axis=-1)
            i, f, o = jax.nn.sigmoid(i), jax.nn.sigmoid(f), jax.nn.sigmoid(o)
            gg = jnp.tanh(gg)
            c = f * c + i * gg
            h = o * jnp.tanh(c)
        return h

    hb = lstm_last_h(params["buggy_embedding"], buggy_input,
                     params["lstm_b_w_ih"], params["lstm_b_w_hh"],
                     params["lstm_b_b_ih"], params["lstm_b_b_hh"])
    hp = lstm_last_h(params["patch_embedding"], patch_input,
                     params["lstm_p_w_ih"], params["lstm_p_w_hh"],
                     params["lstm_p_b_ih"], params["lstm_p_b_hh"])
    x = jnp.concatenate([hb, hp], axis=1) @ params["fc1_w"].T + params["fc1_b"]
    mean = x.mean(-1, keepdims=True)
    var = ((x - mean) ** 2).mean(-1, keepdims=True)
    x = (x - mean) / jnp.sqrt(var + 1e-5) * params["ln_gamma"] + params["ln_beta"]
    x = jnp.maximum(x, 0.0)
    return x @ params["fc2_w"].T + params["fc2_b"]


# ---------------------------------------------------------------------------
# Deterministic parameter construction (synthetic weights; no checkpoints)
# ---------------------------------------------------------------------------
def init_params(key, vocab_size, embedding_dim, hidden_dim, output_dim=2):
    ks = jax.random.split(key, 12)
    E, H = embedding_dim, hidden_dim
    s_lstm = 1.0 / jnp.sqrt(jnp.float32(H))
    s_fc1 = 1.0 / jnp.sqrt(jnp.float32(2 * H))
    s_fc2 = 1.0 / jnp.sqrt(jnp.float32(H))
    u = lambda k, shape, s: jax.random.uniform(k, shape, jnp.float32, -s, s)
    return {
        "buggy_embedding": jax.random.normal(ks[0], (vocab_size, E), jnp.float32),
        "patch_embedding": jax.random.normal(ks[1], (vocab_size, E), jnp.float32),
        "lstm_b_w_ih": u(ks[2], (4 * H, E), s_lstm),
        "lstm_b_w_hh": u(ks[3], (4 * H, H), s_lstm),
        "lstm_b_b_ih": u(ks[4], (4 * H,), s_lstm),
        "lstm_b_b_hh": u(ks[5], (4 * H,), s_lstm),
        "lstm_p_w_ih": u(ks[6], (4 * H, E), s_lstm),
        "lstm_p_w_hh": u(ks[7], (4 * H, H), s_lstm),
        "lstm_p_b_ih": u(ks[8], (4 * H,), s_lstm),
        "lstm_p_b_hh": u(ks[9], (4 * H,), s_lstm),
        "fc1_w": u(ks[10], (H, 2 * H), s_fc1),
        "fc1_b": jnp.zeros((H,), jnp.float32),
        "ln_gamma": jnp.ones((H,), jnp.float32),
        "ln_beta": jnp.zeros((H,), jnp.float32),
        "fc2_w": u(ks[11], (output_dim, H), s_fc2),
        "fc2_b": jnp.zeros((output_dim,), jnp.float32),
    }


if __name__ == "__main__":
    VOCAB, EMB, HID, OUT = 100, 32, 32, 2
    B, T = 2, 8

    key = jax.random.PRNGKey(0)
    k_params, k_b, k_p = jax.random.split(key, 3)
    params = init_params(k_params, VOCAB, EMB, HID, OUT)
    prep = prepare_params(params)        # one-time weight prep, outside the jit

    buggy_input = jax.random.randint(k_b, (B, T), 0, VOCAB, dtype=jnp.int32)
    patch_input = jax.random.randint(k_p, (B, T), 0, VOCAB, dtype=jnp.int32)
    buggy_mask = jnp.ones((B, T), jnp.int32)   # unused (matches reference forward)
    patch_mask = jnp.ones((B, T), jnp.int32)   # unused

    out = discriminator_no_share_s(prep, buggy_input, patch_input,
                                   buggy_mask, patch_mask, out_dim=OUT)
    out = jax.block_until_ready(out)
    assert out.shape == (B, OUT) and out.dtype == jnp.float32

    # Validate against a pure-f32 JAX reference (tolerance accounts for the
    # MXU's internal bf16-pass matmul precision).
    ref = reference_forward(params, buggy_input, patch_input)
    np.testing.assert_allclose(np.asarray(out), np.asarray(ref),
                               rtol=2e-2, atol=2e-2)
    print("KERNEL_OK")
</pallas_src>

<mosaic_0001>
module attributes {stable_mosaic.version = 11 : i64} {
  func.func @_disc_kernel(%arg0: memref<64x64xf32, #tpu.memory_space<vmem>>, %arg1: memref<64x256xf32, #tpu.memory_space<vmem>>, %arg2: memref<1x256xf32, #tpu.memory_space<vmem>>, %arg3: memref<64x256xf32, #tpu.memory_space<vmem>>, %arg4: memref<64x32xf32, #tpu.memory_space<vmem>>, %arg5: memref<1x32xf32, #tpu.memory_space<vmem>>, %arg6: memref<1x32xf32, #tpu.memory_space<vmem>>, %arg7: memref<1x32xf32, #tpu.memory_space<vmem>>, %arg8: memref<32x128xf32, #tpu.memory_space<vmem>>, %arg9: memref<1x128xf32, #tpu.memory_space<vmem>>, %arg10: memref<8x128xf32, #tpu.memory_space<vmem>>) attributes {dimension_semantics = [], scalar_prefetch = 0 : i64, scratch_operands = 0 : i64, tpu.core_type = #tpu.core_type<tc>} {
    %c0 = arith.constant 0 : index
    %c0_0 = arith.constant 0 : index
    %0 = vector.load %arg3[%c0, %c0_0] : memref<64x256xf32, #tpu.memory_space<vmem>>, vector<64x256xf32>
    %c0_1 = arith.constant 0 : index
    %c0_2 = arith.constant 0 : index
    %1 = vector.load %arg0[%c0_1, %c0_2] : memref<64x64xf32, #tpu.memory_space<vmem>>, vector<64x64xf32>
    %c0_3 = arith.constant 0 : index
    %c0_4 = arith.constant 0 : index
    %2 = vector.load %arg1[%c0_3, %c0_4] : memref<64x256xf32, #tpu.memory_space<vmem>>, vector<64x256xf32>
    %cst = arith.constant dense<0.000000e+00> : vector<64x256xf32>
    %3 = tpu.matmul %1, %2, %cst {dimension_numbers = #tpu.dot_dimension_numbers<[1], [0], [0], [1], [0, 0, 1, 1], [], []>} : vector<64x64xf32>, vector<64x256xf32>, vector<64x256xf32> -> vector<64x256xf32>
    %c0_5 = arith.constant 0 : index
    %c0_6 = arith.constant 0 : index
    %4 = vector.load %arg2[%c0_5, %c0_6] : memref<1x256xf32, #tpu.memory_space<vmem>>, vector<1x256xf32>
    %5 = vector.broadcast %4 : vector<1x256xf32> to vector<64x256xf32>
    %6 = arith.addf %3, %5 : vector<64x256xf32>
    %cst_7 = arith.constant 0.000000e+00 : f32
    %7 = vector.broadcast %cst_7 : f32 to vector<8x64xf32>
    %cst_8 = arith.constant 0.000000e+00 : f32
    %8 = vector.broadcast %cst_8 : f32 to vector<8x64xf32>
    %9 = vector.extract_strided_slice %6 {offsets = [0, 0], sizes = [8, 256], strides = [1, 1]} : vector<64x256xf32> to vector<8x256xf32>
    %cst_9 = arith.constant dense<0.000000e+00> : vector<8x256xf32>
    %10 = tpu.matmul %7, %0, %cst_9 {dimension_numbers = #tpu.dot_dimension_numbers<[1], [0], [0], [1], [0, 0, 1, 1], [], []>} : vector<8x64xf32>, vector<64x256xf32>, vector<8x256xf32> -> vector<8x256xf32>
    %11 = arith.addf %9, %10 : vector<8x256xf32>
    %12 = vector.extract_strided_slice %11 {offsets = [0, 0], sizes = [8, 192], strides = [1, 1]} : vector<8x256xf32> to vector<8x192xf32>
    %13 = arith.negf %12 : vector<8x192xf32>
    %14 = math.exp %13 : vector<8x192xf32>
    %cst_10 = arith.constant 1.000000e+00 : f32
    %15 = vector.broadcast %cst_10 : f32 to vector<8x192xf32>
    %16 = arith.addf %15, %14 : vector<8x192xf32>
    %17 = arith.divf %15, %16 : vector<8x192xf32>
    %18 = vector.extract_strided_slice %11 {offsets = [0, 192], sizes = [8, 64], strides = [1, 1]} : vector<8x256xf32> to vector<8x64xf32>
    %19 = math.tanh %18 : vector<8x64xf32>
    %20 = vector.extract_strided_slice %17 {offsets = [0, 64], sizes = [8, 64], strides = [1, 1]} : vector<8x192xf32> to vector<8x64xf32>
    %21 = arith.mulf %20, %8 : vector<8x64xf32>
    %22 = vector.extract_strided_slice %17 {offsets = [0, 0], sizes = [8, 64], strides = [1, 1]} : vector<8x192xf32> to vector<8x64xf32>
    %23 = arith.mulf %22, %19 : vector<8x64xf32>
    %24 = arith.addf %21, %23 : vector<8x64xf32>
    %25 = vector.extract_strided_slice %17 {offsets = [0, 128], sizes = [8, 64], strides = [1, 1]} : vector<8x192xf32> to vector<8x64xf32>
    %26 = math.tanh %24 : vector<8x64xf32>
    %27 = arith.mulf %25, %26 : vector<8x64xf32>
    %28 = vector.extract_strided_slice %6 {offsets = [8, 0], sizes = [8, 256], strides = [1, 1]} : vector<64x256xf32> to vector<8x256xf32>
    %cst_11 = arith.constant dense<0.000000e+00> : vector<8x256xf32>
    %29 = tpu.matmul %27, %0, %cst_11 {dimension_numbers = #tpu.dot_dimension_numbers<[1], [0], [0], [1], [0, 0, 1, 1], [], []>} : vector<8x64xf32>, vector<64x256xf32>, vector<8x256xf32> -> vector<8x256xf32>
    %30 = arith.addf %28, %29 : vector<8x256xf32>
    %31 = vector.extract_strided_slice %30 {offsets = [0, 0], sizes = [8, 192], strides = [1, 1]} : vector<8x256xf32> to vector<8x192xf32>
    %32 = arith.negf %31 : vector<8x192xf32>
    %33 = math.exp %32 : vector<8x192xf32>
    %cst_12 = arith.constant 1.000000e+00 : f32
    %34 = vector.broadcast %cst_12 : f32 to vector<8x192xf32>
    %35 = arith.addf %34, %33 : vector<8x192xf32>
    %36 = arith.divf %34, %35 : vector<8x192xf32>
    %37 = vector.extract_strided_slice %30 {offsets = [0, 192], sizes = [8, 64], strides = [1, 1]} : vector<8x256xf32> to vector<8x64xf32>
    %38 = math.tanh %37 : vector<8x64xf32>
    %39 = vector.extract_strided_slice %36 {offsets = [0, 64], sizes = [8, 64], strides = [1, 1]} : vector<8x192xf32> to vector<8x64xf32>
    %40 = arith.mulf %39, %24 : vector<8x64xf32>
    %41 = vector.extract_strided_slice %36 {offsets = [0, 0], sizes = [8, 64], strides = [1, 1]} : vector<8x192xf32> to vector<8x64xf32>
    %42 = arith.mulf %41, %38 : vector<8x64xf32>
    %43 = arith.addf %40, %42 : vector<8x64xf32>
    %44 = vector.extract_strided_slice %36 {offsets = [0, 128], sizes = [8, 64], strides = [1, 1]} : vector<8x192xf32> to vector<8x64xf32>
    %45 = math.tanh %43 : vector<8x64xf32>
    %46 = arith.mulf %44, %45 : vector<8x64xf32>
    %47 = vector.extract_strided_slice %6 {offsets = [16, 0], sizes = [8, 256], strides = [1, 1]} : vector<64x256xf32> to vector<8x256xf32>
    %cst_13 = arith.constant dense<0.000000e+00> : vector<8x256xf32>
    %48 = tpu.matmul %46, %0, %cst_13 {dimension_numbers = #tpu.dot_dimension_numbers<[1], [0], [0], [1], [0, 0, 1, 1], [], []>} : vector<8x64xf32>, vector<64x256xf32>, vector<8x256xf32> -> vector<8x256xf32>
    %49 = arith.addf %47, %48 : vector<8x256xf32>
    %50 = vector.extract_strided_slice %49 {offsets = [0, 0], sizes = [8, 192], strides = [1, 1]} : vector<8x256xf32> to vector<8x192xf32>
    %51 = arith.negf %50 : vector<8x192xf32>
    %52 = math.exp %51 : vector<8x192xf32>
    %cst_14 = arith.constant 1.000000e+00 : f32
    %53 = vector.broadcast %cst_14 : f32 to vector<8x192xf32>
    %54 = arith.addf %53, %52 : vector<8x192xf32>
    %55 = arith.divf %53, %54 : vector<8x192xf32>
    %56 = vector.extract_strided_slice %49 {offsets = [0, 192], sizes = [8, 64], strides = [1, 1]} : vector<8x256xf32> to vector<8x64xf32>
    %57 = math.tanh %56 : vector<8x64xf32>
    %58 = vector.extract_strided_slice %55 {offsets = [0, 64], sizes = [8, 64], strides = [1, 1]} : vector<8x192xf32> to vector<8x64xf32>
    %59 = arith.mulf %58, %43 : vector<8x64xf32>
    %60 = vector.extract_strided_slice %55 {offsets = [0, 0], sizes = [8, 64], strides = [1, 1]} : vector<8x192xf32> to vector<8x64xf32>
    %61 = arith.mulf %60, %57 : vector<8x64xf32>
    %62 = arith.addf %59, %61 : vector<8x64xf32>
    %63 = vector.extract_strided_slice %55 {offsets = [0, 128], sizes = [8, 64], strides = [1, 1]} : vector<8x192xf32> to vector<8x64xf32>
    %64 = math.tanh %62 : vector<8x64xf32>
    %65 = arith.mulf %63, %64 : vector<8x64xf32>
    %66 = vector.extract_strided_slice %6 {offsets = [24, 0], sizes = [8, 256], strides = [1, 1]} : vector<64x256xf32> to vector<8x256xf32>
    %cst_15 = arith.constant dense<0.000000e+00> : vector<8x256xf32>
    %67 = tpu.matmul %65, %0, %cst_15 {dimension_numbers = #tpu.dot_dimension_numbers<[1], [0], [0], [1], [0, 0, 1, 1], [], []>} : vector<8x64xf32>, vector<64x256xf32>, vector<8x256xf32> -> vector<8x256xf32>
    %68 = arith.addf %66, %67 : vector<8x256xf32>
    %69 = vector.extract_strided_slice %68 {offsets = [0, 0], sizes = [8, 192], strides = [1, 1]} : vector<8x256xf32> to vector<8x192xf32>
    %70 = arith.negf %69 : vector<8x192xf32>
    %71 = math.exp %70 : vector<8x192xf32>
    %cst_16 = arith.constant 1.000000e+00 : f32
    %72 = vector.broadcast %cst_16 : f32 to vector<8x192xf32>
    %73 = arith.addf %72, %71 : vector<8x192xf32>
    %74 = arith.divf %72, %73 : vector<8x192xf32>
    %75 = vector.extract_strided_slice %68 {offsets = [0, 192], sizes = [8, 64], strides = [1, 1]} : vector<8x256xf32> to vector<8x64xf32>
    %76 = math.tanh %75 : vector<8x64xf32>
    %77 = vector.extract_strided_slice %74 {offsets = [0, 64], sizes = [8, 64], strides = [1, 1]} : vector<8x192xf32> to vector<8x64xf32>
    %78 = arith.mulf %77, %62 : vector<8x64xf32>
    %79 = vector.extract_strided_slice %74 {offsets = [0, 0], sizes = [8, 64], strides = [1, 1]} : vector<8x192xf32> to vector<8x64xf32>
    %80 = arith.mulf %79, %76 : vector<8x64xf32>
    %81 = arith.addf %78, %80 : vector<8x64xf32>
    %82 = vector.extract_strided_slice %74 {offsets = [0, 128], sizes = [8, 64], strides = [1, 1]} : vector<8x192xf32> to vector<8x64xf32>
    %83 = math.tanh %81 : vector<8x64xf32>
    %84 = arith.mulf %82, %83 : vector<8x64xf32>
    %85 = vector.extract_strided_slice %6 {offsets = [32, 0], sizes = [8, 256], strides = [1, 1]} : vector<64x256xf32> to vector<8x256xf32>
    %cst_17 = arith.constant dense<0.000000e+00> : vector<8x256xf32>
    %86 = tpu.matmul %84, %0, %cst_17 {dimension_numbers = #tpu.dot_dimension_numbers<[1], [0], [0], [1], [0, 0, 1, 1], [], []>} : vector<8x64xf32>, vector<64x256xf32>, vector<8x256xf32> -> vector<8x256xf32>
    %87 = arith.addf %85, %86 : vector<8x256xf32>
    %88 = vector.extract_strided_slice %87 {offsets = [0, 0], sizes = [8, 192], strides = [1, 1]} : vector<8x256xf32> to vector<8x192xf32>
    %89 = arith.negf %88 : vector<8x192xf32>
    %90 = math.exp %89 : vector<8x192xf32>
    %cst_18 = arith.constant 1.000000e+00 : f32
    %91 = vector.broadcast %cst_18 : f32 to vector<8x192xf32>
    %92 = arith.addf %91, %90 : vector<8x192xf32>
    %93 = arith.divf %91, %92 : vector<8x192xf32>
    %94 = vector.extract_strided_slice %87 {offsets = [0, 192], sizes = [8, 64], strides = [1, 1]} : vector<8x256xf32> to vector<8x64xf32>
    %95 = math.tanh %94 : vector<8x64xf32>
    %96 = vector.extract_strided_slice %93 {offsets = [0, 64], sizes = [8, 64], strides = [1, 1]} : vector<8x192xf32> to vector<8x64xf32>
    %97 = arith.mulf %96, %81 : vector<8x64xf32>
    %98 = vector.extract_strided_slice %93 {offsets = [0, 0], sizes = [8, 64], strides = [1, 1]} : vector<8x192xf32> to vector<8x64xf32>
    %99 = arith.mulf %98, %95 : vector<8x64xf32>
    %100 = arith.addf %97, %99 : vector<8x64xf32>
    %101 = vector.extract_strided_slice %93 {offsets = [0, 128], sizes = [8, 64], strides = [1, 1]} : vector<8x192xf32> to vector<8x64xf32>
    %102 = math.tanh %100 : vector<8x64xf32>
    %103 = arith.mulf %101, %102 : vector<8x64xf32>
    %104 = vector.extract_strided_slice %6 {offsets = [40, 0], sizes = [8, 256], strides = [1, 1]} : vector<64x256xf32> to vector<8x256xf32>
    %cst_19 = arith.constant dense<0.000000e+00> : vector<8x256xf32>
    %105 = tpu.matmul %103, %0, %cst_19 {dimension_numbers = #tpu.dot_dimension_numbers<[1], [0], [0], [1], [0, 0, 1, 1], [], []>} : vector<8x64xf32>, vector<64x256xf32>, vector<8x256xf32> -> vector<8x256xf32>
    %106 = arith.addf %104, %105 : vector<8x256xf32>
    %107 = vector.extract_strided_slice %106 {offsets = [0, 0], sizes = [8, 192], strides = [1, 1]} : vector<8x256xf32> to vector<8x192xf32>
    %108 = arith.negf %107 : vector<8x192xf32>
    %109 = math.exp %108 : vector<8x192xf32>
    %cst_20 = arith.constant 1.000000e+00 : f32
    %110 = vector.broadcast %cst_20 : f32 to vector<8x192xf32>
    %111 = arith.addf %110, %109 : vector<8x192xf32>
    %112 = arith.divf %110, %111 : vector<8x192xf32>
    %113 = vector.extract_strided_slice %106 {offsets = [0, 192], sizes = [8, 64], strides = [1, 1]} : vector<8x256xf32> to vector<8x64xf32>
    %114 = math.tanh %113 : vector<8x64xf32>
    %115 = vector.extract_strided_slice %112 {offsets = [0, 64], sizes = [8, 64], strides = [1, 1]} : vector<8x192xf32> to vector<8x64xf32>
    %116 = arith.mulf %115, %100 : vector<8x64xf32>
    %117 = vector.extract_strided_slice %112 {offsets = [0, 0], sizes = [8, 64], strides = [1, 1]} : vector<8x192xf32> to vector<8x64xf32>
    %118 = arith.mulf %117, %114 : vector<8x64xf32>
    %119 = arith.addf %116, %118 : vector<8x64xf32>
    %120 = vector.extract_strided_slice %112 {offsets = [0, 128], sizes = [8, 64], strides = [1, 1]} : vector<8x192xf32> to vector<8x64xf32>
    %121 = math.tanh %119 : vector<8x64xf32>
    %122 = arith.mulf %120, %121 : vector<8x64xf32>
    %123 = vector.extract_strided_slice %6 {offsets = [48, 0], sizes = [8, 256], strides = [1, 1]} : vector<64x256xf32> to vector<8x256xf32>
    %cst_21 = arith.constant dense<0.000000e+00> : vector<8x256xf32>
    %124 = tpu.matmul %122, %0, %cst_21 {dimension_numbers = #tpu.dot_dimension_numbers<[1], [0], [0], [1], [0, 0, 1, 1], [], []>} : vector<8x64xf32>, vector<64x256xf32>, vector<8x256xf32> -> vector<8x256xf32>
    %125 = arith.addf %123, %124 : vector<8x256xf32>
    %126 = vector.extract_strided_slice %125 {offsets = [0, 0], sizes = [8, 192], strides = [1, 1]} : vector<8x256xf32> to vector<8x192xf32>
    %127 = arith.negf %126 : vector<8x192xf32>
    %128 = math.exp %127 : vector<8x192xf32>
    %cst_22 = arith.constant 1.000000e+00 : f32
    %129 = vector.broadcast %cst_22 : f32 to vector<8x192xf32>
    %130 = arith.addf %129, %128 : vector<8x192xf32>
    %131 = arith.divf %129, %130 : vector<8x192xf32>
    %132 = vector.extract_strided_slice %125 {offsets = [0, 192], sizes = [8, 64], strides = [1, 1]} : vector<8x256xf32> to vector<8x64xf32>
    %133 = math.tanh %132 : vector<8x64xf32>
    %134 = vector.extract_strided_slice %131 {offsets = [0, 64], sizes = [8, 64], strides = [1, 1]} : vector<8x192xf32> to vector<8x64xf32>
    %135 = arith.mulf %134, %119 : vector<8x64xf32>
    %136 = vector.extract_strided_slice %131 {offsets = [0, 0], sizes = [8, 64], strides = [1, 1]} : vector<8x192xf32> to vector<8x64xf32>
    %137 = arith.mulf %136, %133 : vector<8x64xf32>
    %138 = arith.addf %135, %137 : vector<8x64xf32>
    %139 = vector.extract_strided_slice %131 {offsets = [0, 128], sizes = [8, 64], strides = [1, 1]} : vector<8x192xf32> to vector<8x64xf32>
    %140 = math.tanh %138 : vector<8x64xf32>
    %141 = arith.mulf %139, %140 : vector<8x64xf32>
    %142 = vector.extract_strided_slice %6 {offsets = [56, 0], sizes = [8, 256], strides = [1, 1]} : vector<64x256xf32> to vector<8x256xf32>
    %cst_23 = arith.constant dense<0.000000e+00> : vector<8x256xf32>
    %143 = tpu.matmul %141, %0, %cst_23 {dimension_numbers = #tpu.dot_dimension_numbers<[1], [0], [0], [1], [0, 0, 1, 1], [], []>} : vector<8x64xf32>, vector<64x256xf32>, vector<8x256xf32> -> vector<8x256xf32>
    %144 = arith.addf %142, %143 : vector<8x256xf32>
    %145 = vector.extract_strided_slice %144 {offsets = [0, 0], sizes = [8, 192], strides = [1, 1]} : vector<8x256xf32> to vector<8x192xf32>
    %146 = arith.negf %145 : vector<8x192xf32>
    %147 = math.exp %146 : vector<8x192xf32>
    %cst_24 = arith.constant 1.000000e+00 : f32
    %148 = vector.broadcast %cst_24 : f32 to vector<8x192xf32>
    %149 = arith.addf %148, %147 : vector<8x192xf32>
    %150 = arith.divf %148, %149 : vector<8x192xf32>
    %151 = vector.extract_strided_slice %144 {offsets = [0, 192], sizes = [8, 64], strides = [1, 1]} : vector<8x256xf32> to vector<8x64xf32>
    %152 = math.tanh %151 : vector<8x64xf32>
    %153 = vector.extract_strided_slice %150 {offsets = [0, 64], sizes = [8, 64], strides = [1, 1]} : vector<8x192xf32> to vector<8x64xf32>
    %154 = arith.mulf %153, %138 : vector<8x64xf32>
    %155 = vector.extract_strided_slice %150 {offsets = [0, 0], sizes = [8, 64], strides = [1, 1]} : vector<8x192xf32> to vector<8x64xf32>
    %156 = arith.mulf %155, %152 : vector<8x64xf32>
    %157 = arith.addf %154, %156 : vector<8x64xf32>
    %158 = vector.extract_strided_slice %150 {offsets = [0, 128], sizes = [8, 64], strides = [1, 1]} : vector<8x192xf32> to vector<8x64xf32>
    %159 = math.tanh %157 : vector<8x64xf32>
    %160 = arith.mulf %158, %159 : vector<8x64xf32>
    %c0_25 = arith.constant 0 : index
    %c0_26 = arith.constant 0 : index
    %161 = vector.load %arg4[%c0_25, %c0_26] : memref<64x32xf32, #tpu.memory_space<vmem>>, vector<64x32xf32>
    %cst_27 = arith.constant dense<0.000000e+00> : vector<8x32xf32>
    %162 = tpu.matmul %160, %161, %cst_27 {dimension_numbers = #tpu.dot_dimension_numbers<[1], [0], [0], [1], [0, 0, 1, 1], [], []>} : vector<8x64xf32>, vector<64x32xf32>, vector<8x32xf32> -> vector<8x32xf32>
    %c0_28 = arith.constant 0 : index
    %c0_29 = arith.constant 0 : index
    %163 = vector.load %arg5[%c0_28, %c0_29] : memref<1x32xf32, #tpu.memory_space<vmem>>, vector<1x32xf32>
    %164 = vector.broadcast %163 : vector<1x32xf32> to vector<8x32xf32>
    %165 = arith.addf %162, %164 : vector<8x32xf32>
    %cst_30 = arith.constant dense<0.000000e+00> : vector<8xf32>
    %166 = vector.multi_reduction <add>, %165, %cst_30 [1] : vector<8x32xf32> to vector<8xf32>
    %167 = vector.shape_cast %166 : vector<8xf32> to vector<8x1xf32>
    %cst_31 = arith.constant 3.200000e+01 : f32
    %168 = vector.broadcast %cst_31 : f32 to vector<8x1xf32>
    %169 = arith.divf %167, %168 : vector<8x1xf32>
    %170 = vector.broadcast %169 : vector<8x1xf32> to vector<8x32xf32>
    %171 = arith.subf %165, %170 : vector<8x32xf32>
    %172 = arith.mulf %171, %171 : vector<8x32xf32>
    %cst_32 = arith.constant dense<0.000000e+00> : vector<8xf32>
    %173 = vector.multi_reduction <add>, %172, %cst_32 [1] : vector<8x32xf32> to vector<8xf32>
    %174 = vector.shape_cast %173 : vector<8xf32> to vector<8x1xf32>
    %cst_33 = arith.constant 3.200000e+01 : f32
    %175 = vector.broadcast %cst_33 : f32 to vector<8x1xf32>
    %176 = arith.divf %174, %175 : vector<8x1xf32>
    %177 = vector.broadcast %169 : vector<8x1xf32> to vector<8x32xf32>
    %178 = arith.subf %165, %177 : vector<8x32xf32>
    %cst_34 = arith.constant 9.99999974E-6 : f32
    %179 = vector.broadcast %cst_34 : f32 to vector<8x1xf32>
    %180 = arith.addf %176, %179 : vector<8x1xf32>
    %181 = math.rsqrt %180 : vector<8x1xf32>
    %182 = vector.broadcast %181 : vector<8x1xf32> to vector<8x32xf32>
    %183 = arith.mulf %178, %182 : vector<8x32xf32>
    %c0_35 = arith.constant 0 : index
    %c0_36 = arith.constant 0 : index
    %184 = vector.load %arg6[%c0_35, %c0_36] : memref<1x32xf32, #tpu.memory_space<vmem>>, vector<1x32xf32>
    %185 = vector.broadcast %184 : vector<1x32xf32> to vector<8x32xf32>
    %186 = arith.mulf %183, %185 : vector<8x32xf32>
    %c0_37 = arith.constant 0 : index
    %c0_38 = arith.constant 0 : index
    %187 = vector.load %arg7[%c0_37, %c0_38] : memref<1x32xf32, #tpu.memory_space<vmem>>, vector<1x32xf32>
    %188 = vector.broadcast %187 : vector<1x32xf32> to vector<8x32xf32>
    %189 = arith.addf %186, %188 : vector<8x32xf32>
    %cst_39 = arith.constant 0.000000e+00 : f32
    %190 = vector.broadcast %cst_39 : f32 to vector<8x32xf32>
    %191 = arith.maximumf %189, %190 : vector<8x32xf32>
    %c0_40 = arith.constant 0 : index
    %c0_41 = arith.constant 0 : index
    %192 = vector.load %arg8[%c0_40, %c0_41] : memref<32x128xf32, #tpu.memory_space<vmem>>, vector<32x128xf32>
    %cst_42 = arith.constant dense<0.000000e+00> : vector<8x128xf32>
    %193 = tpu.matmul %191, %192, %cst_42 {dimension_numbers = #tpu.dot_dimension_numbers<[1], [0], [0], [1], [0, 0, 1, 1], [], []>} : vector<8x32xf32>, vector<32x128xf32>, vector<8x128xf32> -> vector<8x128xf32>
    %c0_43 = arith.constant 0 : index
    %c0_44 = arith.constant 0 : index
    %194 = vector.load %arg9[%c0_43, %c0_44] : memref<1x128xf32, #tpu.memory_space<vmem>>, vector<1x128xf32>
    %195 = vector.broadcast %194 : vector<1x128xf32> to vector<8x128xf32>
    %196 = arith.addf %193, %195 : vector<8x128xf32>
    %c0_45 = arith.constant 0 : index
    %c0_46 = arith.constant 0 : index
    %197 = vector.load %arg10[%c0_45, %c0_46] : memref<8x128xf32, #tpu.memory_space<vmem>>, vector<8x128xf32>
    tpu.vector_store %arg10[%c0_45, %c0_46], %196 {strides = array<i32>} : memref<8x128xf32, #tpu.memory_space<vmem>>, vector<8x128xf32>,
    return
  }
}

</mosaic_0001>

<llo_original>
// kernel: discriminator_no_share_s.1
$region0: #{discriminator_no_share_s.1}
  #allocation0 [shape = 'u32[]', space=smem, size = 0x4, offset = 0x4, fixed_abs, tag = 'smem constant byte address 0x4 - core index']
  #allocation1 [shape = 'u32[72,128]{1,0:T(1,128)}', space=vmem, size = 0x9000, scoped, tag = 'internal scratch']
  %s0 = inlined_call_operand.vmem [shape: f32[64,64], index: 0, kind: input, shape index: {}]
  %s1 = inlined_call_operand.vmem [shape: f32[64,256], index: 1, kind: input, shape index: {}]
  %s2 = inlined_call_operand.vmem [shape: f32[1,256], index: 2, kind: input, shape index: {}]
  %s3 = inlined_call_operand.vmem [shape: f32[64,256], index: 3, kind: input, shape index: {}]
  %s4 = inlined_call_operand.vmem [shape: f32[64,32], index: 4, kind: input, shape index: {}]
  %s5 = inlined_call_operand.vmem [shape: f32[1,32], index: 5, kind: input, shape index: {}]
  %s6 = inlined_call_operand.vmem [shape: f32[1,32], index: 6, kind: input, shape index: {}]
  %s7 = inlined_call_operand.vmem [shape: f32[1,32], index: 7, kind: input, shape index: {}]
  %s8 = inlined_call_operand.vmem [shape: f32[32,128], index: 8, kind: input, shape index: {}]
  %s9 = inlined_call_operand.vmem [shape: f32[1,128], index: 9, kind: input, shape index: {}]
  %s10 = inlined_call_operand.vmem [shape: f32[8,128], index: 10, kind: output, shape index: {}]
  %s11 = sld [smem:[#allocation0]]
  $region50: #{discriminator_no_share_s.1} parent=0
    _
  %s13 = ssub.s32 1, %s11
  %s14 = scalar_select 0, %s13, %s11
  // Predicated region
  $region2: #{discriminator_no_share_s.1} parent=0 // pred_check
    _
  $region3: #{discriminator_no_share_s.1} parent=0 // pred_check_branch
    %16 = sbr.rel (0) target = $region5
  $region4: #{discriminator_no_share_s.1} parent=0 // pred_region
    _
  $region5: #{discriminator_no_share_s.1} parent=0 // pred_fallthru
    _
  // Predicated region
  $region6: #{discriminator_no_share_s.1} parent=0 // pred_check
    _
  $region7: #{discriminator_no_share_s.1} parent=0 // pred_check_branch
    %18 = sbr.rel (0) target = $region9
  $region8: #{discriminator_no_share_s.1} parent=0 // pred_region
    _
  $region9: #{discriminator_no_share_s.1} parent=0 // pred_fallthru
    _
  // Predicated region
  $region10: #{discriminator_no_share_s.1} parent=0 // pred_check
    _
  $region11: #{discriminator_no_share_s.1} parent=0 // pred_check_branch
    %20 = sbr.rel (0) target = $region13
  $region12: #{discriminator_no_share_s.1} parent=0 // pred_region
    _
  $region13: #{discriminator_no_share_s.1} parent=0 // pred_fallthru
    _
  // Predicated region
  $region14: #{discriminator_no_share_s.1} parent=0 // pred_check
    _
  $region15: #{discriminator_no_share_s.1} parent=0 // pred_check_branch
    %22 = sbr.rel (0) target = $region17
  $region16: #{discriminator_no_share_s.1} parent=0 // pred_region
    _
  $region17: #{discriminator_no_share_s.1} parent=0 // pred_fallthru
    _
  // Predicated region
  $region18: #{discriminator_no_share_s.1} parent=0 // pred_check
    _
  $region19: #{discriminator_no_share_s.1} parent=0 // pred_check_branch
    %24 = sbr.rel (0) target = $region21
  $region20: #{discriminator_no_share_s.1} parent=0 // pred_region
    _
  $region21: #{discriminator_no_share_s.1} parent=0 // pred_fallthru
    _
  // Predicated region
  $region22: #{discriminator_no_share_s.1} parent=0 // pred_check
    _
  $region23: #{discriminator_no_share_s.1} parent=0 // pred_check_branch
    %26 = sbr.rel (0) target = $region25
  $region24: #{discriminator_no_share_s.1} parent=0 // pred_region
    _
  $region25: #{discriminator_no_share_s.1} parent=0 // pred_fallthru
    _
  // Predicated region
  $region26: #{discriminator_no_share_s.1} parent=0 // pred_check
    _
  $region27: #{discriminator_no_share_s.1} parent=0 // pred_check_branch
    %28 = sbr.rel (0) target = $region29
  $region28: #{discriminator_no_share_s.1} parent=0 // pred_region
    _
  $region29: #{discriminator_no_share_s.1} parent=0 // pred_fallthru
    _
  // Predicated region
  $region30: #{discriminator_no_share_s.1} parent=0 // pred_check
    _
  $region31: #{discriminator_no_share_s.1} parent=0 // pred_check_branch
    %30 = sbr.rel (0) target = $region33
  $region32: #{discriminator_no_share_s.1} parent=0 // pred_region
    _
  $region33: #{discriminator_no_share_s.1} parent=0 // pred_fallthru
    _
  // Predicated region
  $region34: #{discriminator_no_share_s.1} parent=0 // pred_check
    _
  $region35: #{discriminator_no_share_s.1} parent=0 // pred_check_branch
    %32 = sbr.rel (0) target = $region37
  $region36: #{discriminator_no_share_s.1} parent=0 // pred_region
    _
  $region37: #{discriminator_no_share_s.1} parent=0 // pred_fallthru
    _
  // Predicated region
  $region38: #{discriminator_no_share_s.1} parent=0 // pred_check
    _
  $region39: #{discriminator_no_share_s.1} parent=0 // pred_check_branch
    %34 = sbr.rel (0) target = $region41
  $region40: #{discriminator_no_share_s.1} parent=0 // pred_region
    _
  $region41: #{discriminator_no_share_s.1} parent=0 // pred_fallthru
    _
  %v35 = vld [vmem:[%s3] sm:$0xff]
  %v36 = vld [vmem:[%s3 + $0x8] sm:$0xff]
  %v37 = vld [vmem:[%s3 + $0x10] sm:$0xff]
  %v38 = vld [vmem:[%s3 + $0x18] sm:$0xff]
  %v39 = vld [vmem:[%s3 + $0x20] sm:$0xff]
  %v40 = vld [vmem:[%s3 + $0x28] sm:$0xff]
  %v41 = vld [vmem:[%s3 + $0x30] sm:$0xff]
  %v42 = vld [vmem:[%s3 + $0x38] sm:$0xff]
  %v43 = vld [vmem:[%s3 + $0x40] sm:$0xff]
  %v44 = vld [vmem:[%s3 + $0x48] sm:$0xff]
  %v45 = vld [vmem:[%s3 + $0x50] sm:$0xff]
  %v46 = vld [vmem:[%s3 + $0x58] sm:$0xff]
  %v47 = vld [vmem:[%s3 + $0x60] sm:$0xff]
  %v48 = vld [vmem:[%s3 + $0x68] sm:$0xff]
  %v49 = vld [vmem:[%s3 + $0x70] sm:$0xff]
  %v50 = vld [vmem:[%s3 + $0x78] sm:$0xff]
  %v51 = vld [vmem:[%s0] sm:$0xff]
  %v52 = vld [vmem:[%s0 + $0x8] sm:$0xff]
  %v53 = vld [vmem:[%s0 + $0x10] sm:$0xff]
  %v54 = vld [vmem:[%s0 + $0x18] sm:$0xff]
  %v55 = vld [vmem:[%s0 + $0x20] sm:$0xff]
  %v56 = vld [vmem:[%s0 + $0x28] sm:$0xff]
  %v57 = vld [vmem:[%s0 + $0x30] sm:$0xff]
  %v58 = vld [vmem:[%s0 + $0x38] sm:$0xff]
  %v59 = vld [vmem:[%s1] sm:$0xff]
  %v60 = vld [vmem:[%s1 + $0x8] sm:$0xff]
  %v61 = vld [vmem:[%s1 + $0x10] sm:$0xff]
  %v62 = vld [vmem:[%s1 + $0x18] sm:$0xff]
  %v63 = vld [vmem:[%s1 + $0x20] sm:$0xff]
  %v64 = vld [vmem:[%s1 + $0x28] sm:$0xff]
  %v65 = vld [vmem:[%s1 + $0x30] sm:$0xff]
  %v66 = vld [vmem:[%s1 + $0x38] sm:$0xff]
  %v67 = vld [vmem:[%s1 + $0x40] sm:$0xff]
  %v68 = vld [vmem:[%s1 + $0x48] sm:$0xff]
  %v69 = vld [vmem:[%s1 + $0x50] sm:$0xff]
  %v70 = vld [vmem:[%s1 + $0x58] sm:$0xff]
  %v71 = vld [vmem:[%s1 + $0x60] sm:$0xff]
  %v72 = vld [vmem:[%s1 + $0x68] sm:$0xff]
  %v73 = vld [vmem:[%s1 + $0x70] sm:$0xff]
  %v74 = vld [vmem:[%s1 + $0x78] sm:$0xff]
  %v75 = vld [vmem:[%s2] sm:$0x3]
  %v77 = vperm.slane %v75, 0
  %v78 = vperm.slane %v75, 1
  %vm81 = vcmask 523264
  %v83 = vsel %vm81, %v51, 0
  %v86 = vsel %vm81, %v52, 0
  %v89 = vsel %vm81, %v53, 0
  %v92 = vsel %vm81, %v54, 0
  %v95 = vsel %vm81, %v55, 0
  %v98 = vsel %vm81, %v56, 0
  %v101 = vsel %vm81, %v57, 0
  %v104 = vsel %vm81, %v58, 0
  %106 = vmatpush.msra.mxu0 0.0
  %107 = vmatpush.msra.mxu0 0.0
  %108 = vmatpush.msra.mxu0 0.0
  %109 = vmatpush.msra.mxu0 0.0
  %110 = vmatpush.msra.mxu0 0.0
  %111 = vmatpush.msra.mxu0 0.0
  %112 = vmatpush.msra.mxu0 0.0
  %113 = vmatpush.msra.mxu0 0.0
  %114 = vmatpush.msra.mxu0 %v73
  %115 = vmatpush.msra.mxu0 %v71
  %116 = vmatpush.msra.mxu0 %v69
  %117 = vmatpush.msra.mxu0 %v67
  %118 = vmatpush.msra.mxu0 %v65
  %119 = vmatpush.msra.mxu0 %v63
  %120 = vmatpush.msra.mxu0 %v61
  %121 = vmatpush.msra.mxu0 %v59
  %122 = vmatmul.f32.gmra.mxu0 %v83
  %v123 = vpop.f32.mrf.mxu0
  %v124 = vadd.f32 %v77, %v123
  %125 = vmatmul.f32.gmra.mxu0 %v86
  %v126 = vpop.f32.mrf.mxu0
  %v127 = vadd.f32 %v77, %v126
  %128 = vmatmul.f32.gmra.mxu0 %v89
  %v129 = vpop.f32.mrf.mxu0
  %v130 = vadd.f32 %v77, %v129
  %131 = vmatmul.f32.gmra.mxu0 %v92
  %v132 = vpop.f32.mrf.mxu0
  %v133 = vadd.f32 %v77, %v132
  %134 = vmatmul.f32.gmra.mxu0 %v95
  %v135 = vpop.f32.mrf.mxu0
  %v136 = vadd.f32 %v77, %v135
  %137 = vmatmul.f32.gmra.mxu0 %v98
  %v138 = vpop.f32.mrf.mxu0
  %v139 = vadd.f32 %v77, %v138
  %140 = vmatmul.f32.gmra.mxu0 %v101
  %v141 = vpop.f32.mrf.mxu0
  %v142 = vadd.f32 %v77, %v141
  %143 = vmatmul.f32.gmra.mxu0 %v104
  %v144 = vpop.f32.mrf.mxu0
  %v145 = vadd.f32 %v77, %v144
  %146 = vdwg.mxu0
  %147 = vmatpush.msra.mxu0 0.0
  %148 = vmatpush.msra.mxu0 0.0
  %149 = vmatpush.msra.mxu0 0.0
  %150 = vmatpush.msra.mxu0 0.0
  %151 = vmatpush.msra.mxu0 0.0
  %152 = vmatpush.msra.mxu0 0.0
  %153 = vmatpush.msra.mxu0 0.0
  %154 = vmatpush.msra.mxu0 0.0
  %155 = vmatpush.msra.mxu0 %v74
  %156 = vmatpush.msra.mxu0 %v72
  %157 = vmatpush.msra.mxu0 %v70
  %158 = vmatpush.msra.mxu0 %v68
  %159 = vmatpush.msra.mxu0 %v66
  %160 = vmatpush.msra.mxu0 %v64
  %161 = vmatpush.msra.mxu0 %v62
  %162 = vmatpush.msra.mxu0 %v60
  %163 = vmatmul.f32.gmra.mxu0 %v83
  %v164 = vpop.f32.mrf.mxu0
  %v165 = vadd.f32 %v78, %v164
  %166 = vmatmul.f32.gmra.mxu0 %v86
  %v167 = vpop.f32.mrf.mxu0
  %v168 = vadd.f32 %v78, %v167
  %169 = vmatmul.f32.gmra.mxu0 %v89
  %v170 = vpop.f32.mrf.mxu0
  %v171 = vadd.f32 %v78, %v170
  %172 = vmatmul.f32.gmra.mxu0 %v92
  %v173 = vpop.f32.mrf.mxu0
  %v174 = vadd.f32 %v78, %v173
  %175 = vmatmul.f32.gmra.mxu0 %v95
  %v176 = vpop.f32.mrf.mxu0
  %v177 = vadd.f32 %v78, %v176
  %178 = vmatmul.f32.gmra.mxu0 %v98
  %v179 = vpop.f32.mrf.mxu0
  %v180 = vadd.f32 %v78, %v179
  %181 = vmatmul.f32.gmra.mxu0 %v101
  %v182 = vpop.f32.mrf.mxu0
  %v183 = vadd.f32 %v78, %v182
  %184 = vmatmul.f32.gmra.mxu0 %v104
  %v185 = vpop.f32.mrf.mxu0
  %v186 = vadd.f32 %v78, %v185
  %187 = vdwg.mxu0
  %v189 = vsel %vm81, 0.0, 0
  %191 = vmatpush.msra.mxu0 0.0
  %192 = vmatpush.msra.mxu0 0.0
  %193 = vmatpush.msra.mxu0 0.0
  %194 = vmatpush.msra.mxu0 0.0
  %195 = vmatpush.msra.mxu0 0.0
  %196 = vmatpush.msra.mxu0 0.0
  %197 = vmatpush.msra.mxu0 0.0
  %198 = vmatpush.msra.mxu0 0.0
  %199 = vmatpush.msra.mxu0 %v49
  %200 = vmatpush.msra.mxu0 %v47
  %201 = vmatpush.msra.mxu0 %v45
  %202 = vmatpush.msra.mxu0 %v43
  %203 = vmatpush.msra.mxu0 %v41
  %204 = vmatpush.msra.mxu0 %v39
  %205 = vmatpush.msra.mxu0 %v37
  %206 = vmatpush.msra.mxu0 %v35
  %207 = vmatmul.f32.gmra.mxu0 %v189
  %v208 = vpop.f32.mrf.mxu0
  %v209 = vadd.f32 0.0, %v208
  %210 = vdwg.mxu0
  %211 = vmatpush.msra.mxu0 0.0
  %212 = vmatpush.msra.mxu0 0.0
  %213 = vmatpush.msra.mxu0 0.0
  %214 = vmatpush.msra.mxu0 0.0
  %215 = vmatpush.msra.mxu0 0.0
  %216 = vmatpush.msra.mxu0 0.0
  %217 = vmatpush.msra.mxu0 0.0
  %218 = vmatpush.msra.mxu0 0.0
  %219 = vmatpush.msra.mxu0 %v50
  %220 = vmatpush.msra.mxu0 %v48
  %221 = vmatpush.msra.mxu0 %v46
  %222 = vmatpush.msra.mxu0 %v44
  %223 = vmatpush.msra.mxu0 %v42
  %224 = vmatpush.msra.mxu0 %v40
  %225 = vmatpush.msra.mxu0 %v38
  %226 = vmatpush.msra.mxu0 %v36
  %227 = vmatmul.f32.gmra.mxu0 %v189
  %v228 = vpop.f32.mrf.mxu0
  %v229 = vadd.f32 0.0, %v228
  %230 = vdwg.mxu0
  %v231 = vadd.f32 %v124, %v209
  %v232 = vadd.f32 %v165, %v229
  %v233 = vxor.u32 %v231, 2147483648
  %v234 = vxor.u32 %v232, 2147483648
  %v235 = vmul.f32 %v233, 1.442695
  %v236 = vpow.pop %v235
  %v237 = vmul.f32 %v234, 1.442695
  %v238 = vpow.pop %v237
  %v239 = vadd.f32 %v236, 1.0
  %v240 = vadd.f32 %v238, 1.0
  %v241 = vrcp.pop %v239
  %v242 = vmul.f32 %v239, %v241
  %v243 = vsub.f32 1.0, %v242
  %v244 = vmul.f32 %v241, %v243
  %v245 = vadd.f32 %v241, %v244
  %vm246 = vweird.f32 %v239
  %vm247 = vweird.f32 %v241
  %vm248 = vmor %vm246, %vm247
  %v249 = vsel %vm248, %v241, %v245
  %v250 = vand.u32 2147483647, %v239
  %vm251 = vcmp.eq.f32.partialorder %v250, 8.507059e+37
  %v252 = vand.u32 %v239, 2147483648
  %v253 = vor.u32 1.1754944e-38, %v252
  %v254 = vsel %vm251, %v253, %v249
  %v255 = vmul.f32 1.0, %v254
  %v256 = vrcp.pop %v240
  %v257 = vmul.f32 %v240, %v256
  %v258 = vsub.f32 1.0, %v257
  %v259 = vmul.f32 %v256, %v258
  %v260 = vadd.f32 %v256, %v259
  %vm261 = vweird.f32 %v240
  %vm262 = vweird.f32 %v256
  %vm263 = vmor %vm261, %vm262
  %v264 = vsel %vm263, %v256, %v260
  %v265 = vand.u32 2147483647, %v240
  %vm266 = vcmp.eq.f32.partialorder %v265, 8.507059e+37
  %v267 = vand.u32 %v240, 2147483648
  %v268 = vor.u32 1.1754944e-38, %v267
  %v269 = vsel %vm266, %v268, %v264
  %v270 = vmul.f32 1.0, %v269
  %v271 = vtanh.pop %v232
  %v272 = vmul.f32 %v255, 0.0
  %274 = vrot.lane.b32.xlu0 %v271, 64
  %v275 = vpop.permute.xlu0 %274
  %v277 = vmul.f32 %v255, %v275
  %279 = vrot.lane.b32.xlu0 %v277, 64
  %v280 = vpop.permute.xlu0 %279
  %v282 = vadd.f32 %v272, %v280
  %v283 = vtanh.pop %v282
  %285 = vrot.lane.b32.xlu0 %v283, 64
  %v286 = vpop.permute.xlu0 %285
  %v288 = vmul.f32 %v270, %v286
  %v290 = vsel %vm81, %v288, 0
  %292 = vmatpush.msra.mxu0 0.0
  %293 = vmatpush.msra.mxu0 0.0
  %294 = vmatpush.msra.mxu0 0.0
  %295 = vmatpush.msra.mxu0 0.0
  %296 = vmatpush.msra.mxu0 0.0
  %297 = vmatpush.msra.mxu0 0.0
  %298 = vmatpush.msra.mxu0 0.0
  %299 = vmatpush.msra.mxu0 0.0
  %300 = vmatpush.msra.mxu0 %v49
  %301 = vmatpush.msra.mxu0 %v47
  %302 = vmatpush.msra.mxu0 %v45
  %303 = vmatpush.msra.mxu0 %v43
  %304 = vmatpush.msra.mxu0 %v41
  %305 = vmatpush.msra.mxu0 %v39
  %306 = vmatpush.msra.mxu0 %v37
  %307 = vmatpush.msra.mxu0 %v35
  %308 = vmatmul.f32.gmra.mxu0 %v290
  %v309 = vpop.f32.mrf.mxu0
  %v310 = vadd.f32 0.0, %v309
  %311 = vdwg.mxu0
  %312 = vmatpush.msra.mxu0 0.0
  %313 = vmatpush.msra.mxu0 0.0
  %314 = vmatpush.msra.mxu0 0.0
  %315 = vmatpush.msra.mxu0 0.0
  %316 = vmatpush.msra.mxu0 0.0
  %317 = vmatpush.msra.mxu0 0.0
  %318 = vmatpush.msra.mxu0 0.0
  %319 = vmatpush.msra.mxu0 0.0
  %320 = vmatpush.msra.mxu0 %v50
  %321 = vmatpush.msra.mxu0 %v48
  %322 = vmatpush.msra.mxu0 %v46
  %323 = vmatpush.msra.mxu0 %v44
  %324 = vmatpush.msra.mxu0 %v42
  %325 = vmatpush.msra.mxu0 %v40
  %326 = vmatpush.msra.mxu0 %v38
  %327 = vmatpush.msra.mxu0 %v36
  %328 = vmatmul.f32.gmra.mxu0 %v290
  %v329 = vpop.f32.mrf.mxu0
  %v330 = vadd.f32 0.0, %v329
  %331 = vdwg.mxu0
  %v332 = vadd.f32 %v127, %v310
  %v333 = vadd.f32 %v168, %v330
  %v334 = vxor.u32 %v332, 2147483648
  %v335 = vxor.u32 %v333, 2147483648
  %v336 = vmul.f32 %v334, 1.442695
  %v337 = vpow.pop %v336
  %v338 = vmul.f32 %v335, 1.442695
  %v339 = vpow.pop %v338
  %v340 = vadd.f32 %v337, 1.0
  %v341 = vadd.f32 %v339, 1.0
  %v342 = vrcp.pop %v340
  %v343 = vmul.f32 %v340, %v342
  %v344 = vsub.f32 1.0, %v343
  %v345 = vmul.f32 %v342, %v344
  %v346 = vadd.f32 %v342, %v345
  %vm347 = vweird.f32 %v340
  %vm348 = vweird.f32 %v342
  %vm349 = vmor %vm347, %vm348
  %v350 = vsel %vm349, %v342, %v346
  %v351 = vand.u32 2147483647, %v340
  %vm352 = vcmp.eq.f32.partialorder %v351, 8.507059e+37
  %v353 = vand.u32 %v340, 2147483648
  %v354 = vor.u32 1.1754944e-38, %v353
  %v355 = vsel %vm352, %v354, %v350
  %v356 = vmul.f32 1.0, %v355
  %v357 = vrcp.pop %v341
  %v358 = vmul.f32 %v341, %v357
  %v359 = vsub.f32 1.0, %v358
  %v360 = vmul.f32 %v357, %v359
  %v361 = vadd.f32 %v357, %v360
  %vm362 = vweird.f32 %v341
  %vm363 = vweird.f32 %v357
  %vm364 = vmor %vm362, %vm363
  %v365 = vsel %vm364, %v357, %v361
  %v366 = vand.u32 2147483647, %v341
  %vm367 = vcmp.eq.f32.partialorder %v366, 8.507059e+37
  %v368 = vand.u32 %v341, 2147483648
  %v369 = vor.u32 1.1754944e-38, %v368
  %v370 = vsel %vm367, %v369, %v365
  %v371 = vmul.f32 1.0, %v370
  %v372 = vtanh.pop %v333
  %v373 = vmul.f32 %v356, %v282
  %375 = vrot.lane.b32.xlu0 %v372, 64
  %v376 = vpop.permute.xlu0 %375
  %v378 = vmul.f32 %v356, %v376
  %380 = vrot.lane.b32.xlu0 %v378, 64
  %v381 = vpop.permute.xlu0 %380
  %v383 = vadd.f32 %v373, %v381
  %v384 = vtanh.pop %v383
  %386 = vrot.lane.b32.xlu0 %v384, 64
  %v387 = vpop.permute.xlu0 %386
  %v389 = vmul.f32 %v371, %v387
  %v391 = vsel %vm81, %v389, 0
  %393 = vmatpush.msra.mxu0 0.0
  %394 = vmatpush.msra.mxu0 0.0
  %395 = vmatpush.msra.mxu0 0.0
  %396 = vmatpush.msra.mxu0 0.0
  %397 = vmatpush.msra.mxu0 0.0
  %398 = vmatpush.msra.mxu0 0.0
  %399 = vmatpush.msra.mxu0 0.0
  %400 = vmatpush.msra.mxu0 0.0
  %401 = vmatpush.msra.mxu0 %v49
  %402 = vmatpush.msra.mxu0 %v47
  %403 = vmatpush.msra.mxu0 %v45
  %404 = vmatpush.msra.mxu0 %v43
  %405 = vmatpush.msra.mxu0 %v41
  %406 = vmatpush.msra.mxu0 %v39
  %407 = vmatpush.msra.mxu0 %v37
  %408 = vmatpush.msra.mxu0 %v35
  %409 = vmatmul.f32.gmra.mxu0 %v391
  %v410 = vpop.f32.mrf.mxu0
  %v411 = vadd.f32 0.0, %v410
  %412 = vdwg.mxu0
  %413 = vmatpush.msra.mxu0 0.0
  %414 = vmatpush.msra.mxu0 0.0
  %415 = vmatpush.msra.mxu0 0.0
  %416 = vmatpush.msra.mxu0 0.0
  %417 = vmatpush.msra.mxu0 0.0
  %418 = vmatpush.msra.mxu0 0.0
  %419 = vmatpush.msra.mxu0 0.0
  %420 = vmatpush.msra.mxu0 0.0
  %421 = vmatpush.msra.mxu0 %v50
  %422 = vmatpush.msra.mxu0 %v48
  %423 = vmatpush.msra.mxu0 %v46
  %424 = vmatpush.msra.mxu0 %v44
  %425 = vmatpush.msra.mxu0 %v42
  %426 = vmatpush.msra.mxu0 %v40
  %427 = vmatpush.msra.mxu0 %v38
  %428 = vmatpush.msra.mxu0 %v36
  %429 = vmatmul.f32.gmra.mxu0 %v391
  %v430 = vpop.f32.mrf.mxu0
  %v431 = vadd.f32 0.0, %v430
  %432 = vdwg.mxu0
  %v433 = vadd.f32 %v130, %v411
  %v434 = vadd.f32 %v171, %v431
  %v435 = vxor.u32 %v433, 2147483648
  %v436 = vxor.u32 %v434, 2147483648
  %v437 = vmul.f32 %v435, 1.442695
  %v438 = vpow.pop %v437
  %v439 = vmul.f32 %v436, 1.442695
  %v440 = vpow.pop %v439
  %v441 = vadd.f32 %v438, 1.0
  %v442 = vadd.f32 %v440, 1.0
  %v443 = vrcp.pop %v441
  %v444 = vmul.f32 %v441, %v443
  %v445 = vsub.f32 1.0, %v444
  %v446 = vmul.f32 %v443, %v445
  %v447 = vadd.f32 %v443, %v446
  %vm448 = vweird.f32 %v441
  %vm449 = vweird.f32 %v443
  %vm450 = vmor %vm448, %vm449
  %v451 = vsel %vm450, %v443, %v447
  %v452 = vand.u32 2147483647, %v441
  %vm453 = vcmp.eq.f32.partialorder %v452, 8.507059e+37
  %v454 = vand.u32 %v441, 2147483648
  %v455 = vor.u32 1.1754944e-38, %v454
  %v456 = vsel %vm453, %v455, %v451
  %v457 = vmul.f32 1.0, %v456
  %v458 = vrcp.pop %v442
  %v459 = vmul.f32 %v442, %v458
  %v460 = vsub.f32 1.0, %v459
  %v461 = vmul.f32 %v458, %v460
  %v462 = vadd.f32 %v458, %v461
  %vm463 = vweird.f32 %v442
  %vm464 = vweird.f32 %v458
  %vm465 = vmor %vm463, %vm464
  %v466 = vsel %vm465, %v458, %v462
  %v467 = vand.u32 2147483647, %v442
  %vm468 = vcmp.eq.f32.partialorder %v467, 8.507059e+37
  %v469 = vand.u32 %v442, 2147483648
  %v470 = vor.u32 1.1754944e-38, %v469
  %v471 = vsel %vm468, %v470, %v466
  %v472 = vmul.f32 1.0, %v471
  %v473 = vtanh.pop %v434
  %v474 = vmul.f32 %v457, %v383
  %476 = vrot.lane.b32.xlu0 %v473, 64
  %v477 = vpop.permute.xlu0 %476
  %v479 = vmul.f32 %v457, %v477
  %481 = vrot.lane.b32.xlu0 %v479, 64
  %v482 = vpop.permute.xlu0 %481
  %v484 = vadd.f32 %v474, %v482
  %v485 = vtanh.pop %v484
  %487 = vrot.lane.b32.xlu0 %v485, 64
  %v488 = vpop.permute.xlu0 %487
  %v490 = vmul.f32 %v472, %v488
  %v492 = vsel %vm81, %v490, 0
  %494 = vmatpush.msra.mxu0 0.0
  %495 = vmatpush.msra.mxu0 0.0
  %496 = vmatpush.msra.mxu0 0.0
  %497 = vmatpush.msra.mxu0 0.0
  %498 = vmatpush.msra.mxu0 0.0
  %499 = vmatpush.msra.mxu0 0.0
  %500 = vmatpush.msra.mxu0 0.0
  %501 = vmatpush.msra.mxu0 0.0
  %502 = vmatpush.msra.mxu0 %v49
  %503 = vmatpush.msra.mxu0 %v47
  %504 = vmatpush.msra.mxu0 %v45
  %505 = vmatpush.msra.mxu0 %v43
  %506 = vmatpush.msra.mxu0 %v41
  %507 = vmatpush.msra.mxu0 %v39
  %508 = vmatpush.msra.mxu0 %v37
  %509 = vmatpush.msra.mxu0 %v35
  %510 = vmatmul.f32.gmra.mxu0 %v492
  %v511 = vpop.f32.mrf.mxu0
  %v512 = vadd.f32 0.0, %v511
  %513 = vdwg.mxu0
  %514 = vmatpush.msra.mxu0 0.0
  %515 = vmatpush.msra.mxu0 0.0
  %516 = vmatpush.msra.mxu0 0.0
  %517 = vmatpush.msra.mxu0 0.0
  %518 = vmatpush.msra.mxu0 0.0
  %519 = vmatpush.msra.mxu0 0.0
  %520 = vmatpush.msra.mxu0 0.0
  %521 = vmatpush.msra.mxu0 0.0
  %522 = vmatpush.msra.mxu0 %v50
  %523 = vmatpush.msra.mxu0 %v48
  %524 = vmatpush.msra.mxu0 %v46
  %525 = vmatpush.msra.mxu0 %v44
  %526 = vmatpush.msra.mxu0 %v42
  %527 = vmatpush.msra.mxu0 %v40
  %528 = vmatpush.msra.mxu0 %v38
  %529 = vmatpush.msra.mxu0 %v36
  %530 = vmatmul.f32.gmra.mxu0 %v492
  %v531 = vpop.f32.mrf.mxu0
  %v532 = vadd.f32 0.0, %v531
  %533 = vdwg.mxu0
  %v534 = vadd.f32 %v133, %v512
  %v535 = vadd.f32 %v174, %v532
  %v536 = vxor.u32 %v534, 2147483648
  %v537 = vxor.u32 %v535, 2147483648
  %v538 = vmul.f32 %v536, 1.442695
  %v539 = vpow.pop %v538
  %v540 = vmul.f32 %v537, 1.442695
  %v541 = vpow.pop %v540
  %v542 = vadd.f32 %v539, 1.0
  %v543 = vadd.f32 %v541, 1.0
  %v544 = vrcp.pop %v542
  %v545 = vmul.f32 %v542, %v544
  %v546 = vsub.f32 1.0, %v545
  %v547 = vmul.f32 %v544, %v546
  %v548 = vadd.f32 %v544, %v547
  %vm549 = vweird.f32 %v542
  %vm550 = vweird.f32 %v544
  %vm551 = vmor %vm549, %vm550
  %v552 = vsel %vm551, %v544, %v548
  %v553 = vand.u32 2147483647, %v542
  %vm554 = vcmp.eq.f32.partialorder %v553, 8.507059e+37
  %v555 = vand.u32 %v542, 2147483648
  %v556 = vor.u32 1.1754944e-38, %v555
  %v557 = vsel %vm554, %v556, %v552
  %v558 = vmul.f32 1.0, %v557
  %v559 = vrcp.pop %v543
  %v560 = vmul.f32 %v543, %v559
  %v561 = vsub.f32 1.0, %v560
  %v562 = vmul.f32 %v559, %v561
  %v563 = vadd.f32 %v559, %v562
  %vm564 = vweird.f32 %v543
  %vm565 = vweird.f32 %v559
  %vm566 = vmor %vm564, %vm565
  %v567 = vsel %vm566, %v559, %v563
  %v568 = vand.u32 2147483647, %v543
  %vm569 = vcmp.eq.f32.partialorder %v568, 8.507059e+37
  %v570 = vand.u32 %v543, 2147483648
  %v571 = vor.u32 1.1754944e-38, %v570
  %v572 = vsel %vm569, %v571, %v567
  %v573 = vmul.f32 1.0, %v572
  %v574 = vtanh.pop %v535
  %v575 = vmul.f32 %v558, %v484
  %577 = vrot.lane.b32.xlu0 %v574, 64
  %v578 = vpop.permute.xlu0 %577
  %v580 = vmul.f32 %v558, %v578
  %582 = vrot.lane.b32.xlu0 %v580, 64
  %v583 = vpop.permute.xlu0 %582
  %v585 = vadd.f32 %v575, %v583
  %v586 = vtanh.pop %v585
  %588 = vrot.lane.b32.xlu0 %v586, 64
  %v589 = vpop.permute.xlu0 %588
  %v591 = vmul.f32 %v573, %v589
  %v593 = vsel %vm81, %v591, 0
  %595 = vmatpush.msra.mxu0 0.0
  %596 = vmatpush.msra.mxu0 0.0
  %597 = vmatpush.msra.mxu0 0.0
  %598 = vmatpush.msra.mxu0 0.0
  %599 = vmatpush.msra.mxu0 0.0
  %600 = vmatpush.msra.mxu0 0.0
  %601 = vmatpush.msra.mxu0 0.0
  %602 = vmatpush.msra.mxu0 0.0
  %603 = vmatpush.msra.mxu0 %v49
  %604 = vmatpush.msra.mxu0 %v47
  %605 = vmatpush.msra.mxu0 %v45
  %606 = vmatpush.msra.mxu0 %v43
  %607 = vmatpush.msra.mxu0 %v41
  %608 = vmatpush.msra.mxu0 %v39
  %609 = vmatpush.msra.mxu0 %v37
  %610 = vmatpush.msra.mxu0 %v35
  %611 = vmatmul.f32.gmra.mxu0 %v593
  %v612 = vpop.f32.mrf.mxu0
  %v613 = vadd.f32 0.0, %v612
  %614 = vdwg.mxu0
  %615 = vmatpush.msra.mxu0 0.0
  %616 = vmatpush.msra.mxu0 0.0
  %617 = vmatpush.msra.mxu0 0.0
  %618 = vmatpush.msra.mxu0 0.0
  %619 = vmatpush.msra.mxu0 0.0
  %620 = vmatpush.msra.mxu0 0.0
  %621 = vmatpush.msra.mxu0 0.0
  %622 = vmatpush.msra.mxu0 0.0
  %623 = vmatpush.msra.mxu0 %v50
  %624 = vmatpush.msra.mxu0 %v48
  %625 = vmatpush.msra.mxu0 %v46
  %626 = vmatpush.msra.mxu0 %v44
  %627 = vmatpush.msra.mxu0 %v42
  %628 = vmatpush.msra.mxu0 %v40
  %629 = vmatpush.msra.mxu0 %v38
  %630 = vmatpush.msra.mxu0 %v36
  %631 = vmatmul.f32.gmra.mxu0 %v593
  %v632 = vpop.f32.mrf.mxu0
  %v633 = vadd.f32 0.0, %v632
  %634 = vdwg.mxu0
  %v635 = vadd.f32 %v136, %v613
  %v636 = vadd.f32 %v177, %v633
  %v637 = vxor.u32 %v635, 2147483648
  %v638 = vxor.u32 %v636, 2147483648
  %v639 = vmul.f32 %v637, 1.442695
  %v640 = vpow.pop %v639
  %v641 = vmul.f32 %v638, 1.442695
  %v642 = vpow.pop %v641
  %v643 = vadd.f32 %v640, 1.0
  %v644 = vadd.f32 %v642, 1.0
  %v645 = vrcp.pop %v643
  %v646 = vmul.f32 %v643, %v645
  %v647 = vsub.f32 1.0, %v646
  %v648 = vmul.f32 %v645, %v647
  %v649 = vadd.f32 %v645, %v648
  %vm650 = vweird.f32 %v643
  %vm651 = vweird.f32 %v645
  %vm652 = vmor %vm650, %vm651
  %v653 = vsel %vm652, %v645, %v649
  %v654 = vand.u32 2147483647, %v643
  %vm655 = vcmp.eq.f32.partialorder %v654, 8.507059e+37
  %v656 = vand.u32 %v643, 2147483648
  %v657 = vor.u32 1.1754944e-38, %v656
  %v658 = vsel %vm655, %v657, %v653
  %v659 = vmul.f32 1.0, %v658
  %v660 = vrcp.pop %v644
  %v661 = vmul.f32 %v644, %v660
  %v662 = vsub.f32 1.0, %v661
  %v663 = vmul.f32 %v660, %v662
  %v664 = vadd.f32 %v660, %v663
  %vm665 = vweird.f32 %v644
  %vm666 = vweird.f32 %v660
  %vm667 = vmor %vm665, %vm666
  %v668 = vsel %vm667, %v660, %v664
  %v669 = vand.u32 2147483647, %v644
  %vm670 = vcmp.eq.f32.partialorder %v669, 8.507059e+37
  %v671 = vand.u32 %v644, 2147483648
  %v672 = vor.u32 1.1754944e-38, %v671
  %v673 = vsel %vm670, %v672, %v668
  %v674 = vmul.f32 1.0, %v673
  %v675 = vtanh.pop %v636
  %v676 = vmul.f32 %v659, %v585
  %678 = vrot.lane.b32.xlu0 %v675, 64
  %v679 = vpop.permute.xlu0 %678
  %v681 = vmul.f32 %v659, %v679
  %683 = vrot.lane.b32.xlu0 %v681, 64
  %v684 = vpop.permute.xlu0 %683
  %v686 = vadd.f32 %v676, %v684
  %v687 = vtanh.pop %v686
  %689 = vrot.lane.b32.xlu0 %v687, 64
  %v690 = vpop.permute.xlu0 %689
  %v692 = vmul.f32 %v674, %v690
  %v694 = vsel %vm81, %v692, 0
  %696 = vmatpush.msra.mxu0 0.0
  %697 = vmatpush.msra.mxu0 0.0
  %698 = vmatpush.msra.mxu0 0.0
  %699 = vmatpush.msra.mxu0 0.0
  %700 = vmatpush.msra.mxu0 0.0
  %701 = vmatpush.msra.mxu0 0.0
  %702 = vmatpush.msra.mxu0 0.0
  %703 = vmatpush.msra.mxu0 0.0
  %704 = vmatpush.msra.mxu0 %v49
  %705 = vmatpush.msra.mxu0 %v47
  %706 = vmatpush.msra.mxu0 %v45
  %707 = vmatpush.msra.mxu0 %v43
  %708 = vmatpush.msra.mxu0 %v41
  %709 = vmatpush.msra.mxu0 %v39
  %710 = vmatpush.msra.mxu0 %v37
  %711 = vmatpush.msra.mxu0 %v35
  %712 = vmatmul.f32.gmra.mxu0 %v694
  %v713 = vpop.f32.mrf.mxu0
  %v714 = vadd.f32 0.0, %v713
  %715 = vdwg.mxu0
  %716 = vmatpush.msra.mxu0 0.0
  %717 = vmatpush.msra.mxu0 0.0
  %718 = vmatpush.msra.mxu0 0.0
  %719 = vmatpush.msra.mxu0 0.0
  %720 = vmatpush.msra.mxu0 0.0
  %721 = vmatpush.msra.mxu0 0.0
  %722 = vmatpush.msra.mxu0 0.0
  %723 = vmatpush.msra.mxu0 0.0
  %724 = vmatpush.msra.mxu0 %v50
  %725 = vmatpush.msra.mxu0 %v48
  %726 = vmatpush.msra.mxu0 %v46
  %727 = vmatpush.msra.mxu0 %v44
  %728 = vmatpush.msra.mxu0 %v42
  %729 = vmatpush.msra.mxu0 %v40
  %730 = vmatpush.msra.mxu0 %v38
  %731 = vmatpush.msra.mxu0 %v36
  %732 = vmatmul.f32.gmra.mxu0 %v694
  %v733 = vpop.f32.mrf.mxu0
  %v734 = vadd.f32 0.0, %v733
  %735 = vdwg.mxu0
  %v736 = vadd.f32 %v139, %v714
  %v737 = vadd.f32 %v180, %v734
  %v738 = vxor.u32 %v736, 2147483648
  %v739 = vxor.u32 %v737, 2147483648
  %v740 = vmul.f32 %v738, 1.442695
  %v741 = vpow.pop %v740
  %v742 = vmul.f32 %v739, 1.442695
  %v743 = vpow.pop %v742
  %v744 = vadd.f32 %v741, 1.0
  %v745 = vadd.f32 %v743, 1.0
  %v746 = vrcp.pop %v744
  %v747 = vmul.f32 %v744, %v746
  %v748 = vsub.f32 1.0, %v747
  %v749 = vmul.f32 %v746, %v748
  %v750 = vadd.f32 %v746, %v749
  %vm751 = vweird.f32 %v744
  %vm752 = vweird.f32 %v746
  %vm753 = vmor %vm751, %vm752
  %v754 = vsel %vm753, %v746, %v750
  %v755 = vand.u32 2147483647, %v744
  %vm756 = vcmp.eq.f32.partialorder %v755, 8.507059e+37
  %v757 = vand.u32 %v744, 2147483648
  %v758 = vor.u32 1.1754944e-38, %v757
  %v759 = vsel %vm756, %v758, %v754
  %v760 = vmul.f32 1.0, %v759
  %v761 = vrcp.pop %v745
  %v762 = vmul.f32 %v745, %v761
  %v763 = vsub.f32 1.0, %v762
  %v764 = vmul.f32 %v761, %v763
  %v765 = vadd.f32 %v761, %v764
  %vm766 = vweird.f32 %v745
  %vm767 = vweird.f32 %v761
  %vm768 = vmor %vm766, %vm767
  %v769 = vsel %vm768, %v761, %v765
  %v770 = vand.u32 2147483647, %v745
  %vm771 = vcmp.eq.f32.partialorder %v770, 8.507059e+37
  %v772 = vand.u32 %v745, 2147483648
  %v773 = vor.u32 1.1754944e-38, %v772
  %v774 = vsel %vm771, %v773, %v769
  %v775 = vmul.f32 1.0, %v774
  %v776 = vtanh.pop %v737
  %v777 = vmul.f32 %v760, %v686
  %779 = vrot.lane.b32.xlu0 %v776, 64
  %v780 = vpop.permute.xlu0 %779
  %v782 = vmul.f32 %v760, %v780
  %784 = vrot.lane.b32.xlu0 %v782, 64
  %v785 = vpop.permute.xlu0 %784
  %v787 = vadd.f32 %v777, %v785
  %v788 = vtanh.pop %v787
  %790 = vrot.lane.b32.xlu0 %v788, 64
  %v791 = vpop.permute.xlu0 %790
  %v793 = vmul.f32 %v775, %v791
  %v795 = vsel %vm81, %v793, 0
  %797 = vmatpush.msra.mxu0 0.0
  %798 = vmatpush.msra.mxu0 0.0
  %799 = vmatpush.msra.mxu0 0.0
  %800 = vmatpush.msra.mxu0 0.0
  %801 = vmatpush.msra.mxu0 0.0
  %802 = vmatpush.msra.mxu0 0.0
  %803 = vmatpush.msra.mxu0 0.0
  %804 = vmatpush.msra.mxu0 0.0
  %805 = vmatpush.msra.mxu0 %v49
  %806 = vmatpush.msra.mxu0 %v47
  %807 = vmatpush.msra.mxu0 %v45
  %808 = vmatpush.msra.mxu0 %v43
  %809 = vmatpush.msra.mxu0 %v41
  %810 = vmatpush.msra.mxu0 %v39
  %811 = vmatpush.msra.mxu0 %v37
  %812 = vmatpush.msra.mxu0 %v35
  %813 = vmatmul.f32.gmra.mxu0 %v795
  %v814 = vpop.f32.mrf.mxu0
  %v815 = vadd.f32 0.0, %v814
  %816 = vdwg.mxu0
  %817 = vmatpush.msra.mxu0 0.0
  %818 = vmatpush.msra.mxu0 0.0
  %819 = vmatpush.msra.mxu0 0.0
  %820 = vmatpush.msra.mxu0 0.0
  %821 = vmatpush.msra.mxu0 0.0
  %822 = vmatpush.msra.mxu0 0.0
  %823 = vmatpush.msra.mxu0 0.0
  %824 = vmatpush.msra.mxu0 0.0
  %825 = vmatpush.msra.mxu0 %v50
  %826 = vmatpush.msra.mxu0 %v48
  %827 = vmatpush.msra.mxu0 %v46
  %828 = vmatpush.msra.mxu0 %v44
  %829 = vmatpush.msra.mxu0 %v42
  %830 = vmatpush.msra.mxu0 %v40
  %831 = vmatpush.msra.mxu0 %v38
  %832 = vmatpush.msra.mxu0 %v36
  %833 = vmatmul.f32.gmra.mxu0 %v795
  %v834 = vpop.f32.mrf.mxu0
  %v835 = vadd.f32 0.0, %v834
  %836 = vdwg.mxu0
  %v837 = vadd.f32 %v142, %v815
  %v838 = vadd.f32 %v183, %v835
  %v839 = vxor.u32 %v837, 2147483648
  %v840 = vxor.u32 %v838, 2147483648
  %v841 = vmul.f32 %v839, 1.442695
  %v842 = vpow.pop %v841
  %v843 = vmul.f32 %v840, 1.442695
  %v844 = vpow.pop %v843
  %v845 = vadd.f32 %v842, 1.0
  %v846 = vadd.f32 %v844, 1.0
  %v847 = vrcp.pop %v845
  %v848 = vmul.f32 %v845, %v847
  %v849 = vsub.f32 1.0, %v848
  %v850 = vmul.f32 %v847, %v849
  %v851 = vadd.f32 %v847, %v850
  %vm852 = vweird.f32 %v845
  %vm853 = vweird.f32 %v847
  %vm854 = vmor %vm852, %vm853
  %v855 = vsel %vm854, %v847, %v851
  %v856 = vand.u32 2147483647, %v845
  %vm857 = vcmp.eq.f32.partialorder %v856, 8.507059e+37
  %v858 = vand.u32 %v845, 2147483648
  %v859 = vor.u32 1.1754944e-38, %v858
  %v860 = vsel %vm857, %v859, %v855
  %v861 = vmul.f32 1.0, %v860
  %v862 = vrcp.pop %v846
  %v863 = vmul.f32 %v846, %v862
  %v864 = vsub.f32 1.0, %v863
  %v865 = vmul.f32 %v862, %v864
  %v866 = vadd.f32 %v862, %v865
  %vm867 = vweird.f32 %v846
  %vm868 = vweird.f32 %v862
  %vm869 = vmor %vm867, %vm868
  %v870 = vsel %vm869, %v862, %v866
  %v871 = vand.u32 2147483647, %v846
  %vm872 = vcmp.eq.f32.partialorder %v871, 8.507059e+37
  %v873 = vand.u32 %v846, 2147483648
  %v874 = vor.u32 1.1754944e-38, %v873
  %v875 = vsel %vm872, %v874, %v870
  %v876 = vmul.f32 1.0, %v875
  %v877 = vtanh.pop %v838
  %v878 = vmul.f32 %v861, %v787
  %880 = vrot.lane.b32.xlu0 %v877, 64
  %v881 = vpop.permute.xlu0 %880
  %v883 = vmul.f32 %v861, %v881
  %885 = vrot.lane.b32.xlu0 %v883, 64
  %v886 = vpop.permute.xlu0 %885
  %v888 = vadd.f32 %v878, %v886
  %v889 = vtanh.pop %v888
  %891 = vrot.lane.b32.xlu0 %v889, 64
  %v892 = vpop.permute.xlu0 %891
  %v894 = vmul.f32 %v876, %v892
  %v896 = vsel %vm81, %v894, 0
  %898 = vmatpush.msra.mxu0 0.0
  %899 = vmatpush.msra.mxu0 0.0
  %900 = vmatpush.msra.mxu0 0.0
  %901 = vmatpush.msra.mxu0 0.0
  %902 = vmatpush.msra.mxu0 0.0
  %903 = vmatpush.msra.mxu0 0.0
  %904 = vmatpush.msra.mxu0 0.0
  %905 = vmatpush.msra.mxu0 0.0
  %906 = vmatpush.msra.mxu0 %v49
  %907 = vmatpush.msra.mxu0 %v47
  %908 = vmatpush.msra.mxu0 %v45
  %909 = vmatpush.msra.mxu0 %v43
  %910 = vmatpush.msra.mxu0 %v41
  %911 = vmatpush.msra.mxu0 %v39
  %912 = vmatpush.msra.mxu0 %v37
  %913 = vmatpush.msra.mxu0 %v35
  %914 = vmatmul.f32.gmra.mxu0 %v896
  %v915 = vpop.f32.mrf.mxu0
  %v916 = vadd.f32 0.0, %v915
  %917 = vdwg.mxu0
  %918 = vmatpush.msra.mxu0 0.0
  %919 = vmatpush.msra.mxu0 0.0
  %920 = vmatpush.msra.mxu0 0.0
  %921 = vmatpush.msra.mxu0 0.0
  %922 = vmatpush.msra.mxu0 0.0
  %923 = vmatpush.msra.mxu0 0.0
  %924 = vmatpush.msra.mxu0 0.0
  %925 = vmatpush.msra.mxu0 0.0
  %926 = vmatpush.msra.mxu0 %v50
  %927 = vmatpush.msra.mxu0 %v48
  %928 = vmatpush.msra.mxu0 %v46
  %929 = vmatpush.msra.mxu0 %v44
  %930 = vmatpush.msra.mxu0 %v42
  %931 = vmatpush.msra.mxu0 %v40
  %932 = vmatpush.msra.mxu0 %v38
  %933 = vmatpush.msra.mxu0 %v36
  %934 = vmatmul.f32.gmra.mxu0 %v896
  %v935 = vpop.f32.mrf.mxu0
  %v936 = vadd.f32 0.0, %v935
  %937 = vdwg.mxu0
  %v938 = vadd.f32 %v145, %v916
  %v939 = vadd.f32 %v186, %v936
  %v940 = vxor.u32 %v938, 2147483648
  %v941 = vxor.u32 %v939, 2147483648
  %v942 = vmul.f32 %v940, 1.442695
  %v943 = vpow.pop %v942
  %v944 = vmul.f32 %v941, 1.442695
  %v945 = vpow.pop %v944
  %v946 = vadd.f32 %v943, 1.0
  %v947 = vadd.f32 %v945, 1.0
  %v948 = vrcp.pop %v946
  %v949 = vmul.f32 %v946, %v948
  %v950 = vsub.f32 1.0, %v949
  %v951 = vmul.f32 %v948, %v950
  %v952 = vadd.f32 %v948, %v951
  %vm953 = vweird.f32 %v946
  %vm954 = vweird.f32 %v948
  %vm955 = vmor %vm953, %vm954
  %v956 = vsel %vm955, %v948, %v952
  %v957 = vand.u32 2147483647, %v946
  %vm958 = vcmp.eq.f32.partialorder %v957, 8.507059e+37
  %v959 = vand.u32 %v946, 2147483648
  %v960 = vor.u32 1.1754944e-38, %v959
  %v961 = vsel %vm958, %v960, %v956
  %v962 = vmul.f32 1.0, %v961
  %v963 = vrcp.pop %v947
  %v964 = vmul.f32 %v947, %v963
  %v965 = vsub.f32 1.0, %v964
  %v966 = vmul.f32 %v963, %v965
  %v967 = vadd.f32 %v963, %v966
  %vm968 = vweird.f32 %v947
  %vm969 = vweird.f32 %v963
  %vm970 = vmor %vm968, %vm969
  %v971 = vsel %vm970, %v963, %v967
  %v972 = vand.u32 2147483647, %v947
  %vm973 = vcmp.eq.f32.partialorder %v972, 8.507059e+37
  %v974 = vand.u32 %v947, 2147483648
  %v975 = vor.u32 1.1754944e-38, %v974
  %v976 = vsel %vm973, %v975, %v971
  %v977 = vmul.f32 1.0, %v976
  %v978 = vtanh.pop %v939
  %v979 = vmul.f32 %v962, %v888
  %981 = vrot.lane.b32.xlu0 %v978, 64
  %v982 = vpop.permute.xlu0 %981
  %v984 = vmul.f32 %v962, %v982
  %986 = vrot.lane.b32.xlu0 %v984, 64
  %v987 = vpop.permute.xlu0 %986
  %v989 = vadd.f32 %v979, %v987
  %v990 = vtanh.pop %v989
  %992 = vrot.lane.b32.xlu0 %v990, 64
  %v993 = vpop.permute.xlu0 %992
  %v995 = vmul.f32 %v977, %v993
  %v996 = vld [vmem:[%s4] sm:$0xff]
  %v997 = vld [vmem:[%s4 + $0x8] sm:$0xff]
  %v998 = vld [vmem:[%s4 + $0x10] sm:$0xff]
  %v999 = vld [vmem:[%s4 + $0x18] sm:$0xff]
  %v1000 = vld [vmem:[%s4 + $0x20] sm:$0xff]
  %v1001 = vld [vmem:[%s4 + $0x28] sm:$0xff]
  %v1002 = vld [vmem:[%s4 + $0x30] sm:$0xff]
  %v1003 = vld [vmem:[%s4 + $0x38] sm:$0xff]
  %v1004 = vld [vmem:[%s5] sm:$0x1]
  %v1006 = vperm.slane %v1004, 0
  %v1009 = vsel %vm81, %v995, 0
  %1011 = vmatpush.msra.mxu0 0.0
  %1012 = vmatpush.msra.mxu0 0.0
  %1013 = vmatpush.msra.mxu0 0.0
  %1014 = vmatpush.msra.mxu0 0.0
  %1015 = vmatpush.msra.mxu0 0.0
  %1016 = vmatpush.msra.mxu0 0.0
  %1017 = vmatpush.msra.mxu0 0.0
  %1018 = vmatpush.msra.mxu0 0.0
  %1019 = vmatpush.msra.mxu0 %v1003
  %1020 = vmatpush.msra.mxu0 %v1002
  %1021 = vmatpush.msra.mxu0 %v1001
  %1022 = vmatpush.msra.mxu0 %v1000
  %1023 = vmatpush.msra.mxu0 %v999
  %1024 = vmatpush.msra.mxu0 %v998
  %1025 = vmatpush.msra.mxu0 %v997
  %1026 = vmatpush.msra.mxu0 %v996
  %1027 = vmatmul.f32.gmra.mxu0 %v1009
  %v1028 = vpop.f32.mrf.mxu0
  %v1029 = vadd.f32 %v1006, %v1028
  %1030 = vdwg.mxu0
  %vm1031 = vcmask 261120
  %v1032 = vsel %vm1031, %v1029, 0.0
  %1033 = vadd.xlane.f32.xlu0 %v1032
  %v1034 = vpop.xlane.xlu0 %1033
  %v1035 = vrcp.pop 32.0
  %v1036 = vmul.f32 32.0, %v1035
  %v1037 = vsub.f32 1.0, %v1036
  %v1038 = vmul.f32 %v1035, %v1037
  %v1039 = vadd.f32 %v1035, %v1038
  %vm1040 = vweird.f32 %v1035
  %v1041 = vsel %vm1040, %v1035, %v1039
  %v1042 = vmul.f32 %v1034, %v1041
  %v1043 = vsub.f32 %v1029, %v1042
  %v1044 = vmul.f32 %v1043, %v1043
  %v1045 = vsel %vm1031, %v1044, 0.0
  %1046 = vadd.xlane.f32.xlu0 %v1045
  %v1047 = vpop.xlane.xlu0 %1046
  %v1048 = vmul.f32 %v1047, %v1041
  %v1049 = vadd.f32 %v1048, 1e-05
  %v1050 = vrsqrt.pop %v1049
  %v1051 = vmul.f32 %v1050, %v1049
  %v1052 = vmul.f32 %v1051, %v1050
  %v1053 = vmul.f32 0.5, %v1052
  %v1054 = vsub.f32 1.5, %v1053
  %v1055 = vmul.f32 %v1050, %v1054
  %vm1056 = vweird.f32 %v1049
  %vm1057 = vweird.f32 %v1050
  %vm1058 = vmor %vm1056, %vm1057
  %v1059 = vsel %vm1058, %v1050, %v1055
  %v1060 = vmul.f32 %v1043, %v1059
  %v1061 = vld [vmem:[%s6] sm:$0x1]
  %v1063 = vperm.slane %v1061, 0
  %v1065 = vmul.f32 %v1060, %v1063
  %v1066 = vld [vmem:[%s7] sm:$0x1]
  %v1068 = vperm.slane %v1066, 0
  %v1070 = vadd.f32 %v1065, %v1068
  %v1071 = vmax.f32 %v1070, 0.0
  %v1072 = vld [vmem:[%s8] sm:$0xff]
  %v1073 = vld [vmem:[%s8 + $0x8] sm:$0xff]
  %v1074 = vld [vmem:[%s8 + $0x10] sm:$0xff]
  %v1075 = vld [vmem:[%s8 + $0x18] sm:$0xff]
  %v1076 = vld [vmem:[%s9] sm:$0x1]
  %v1078 = vperm.slane %v1076, 0
  %v1081 = vsel %vm1031, %v1071, 0
  %1083 = vmatpush.msra.mxu0 0.0
  %1084 = vmatpush.msra.mxu0 0.0
  %1085 = vmatpush.msra.mxu0 0.0
  %1086 = vmatpush.msra.mxu0 0.0
  %1087 = vmatpush.msra.mxu0 0.0
  %1088 = vmatpush.msra.mxu0 0.0
  %1089 = vmatpush.msra.mxu0 0.0
  %1090 = vmatpush.msra.mxu0 0.0
  %1091 = vmatpush.msra.mxu0 0.0
  %1092 = vmatpush.msra.mxu0 0.0
  %1093 = vmatpush.msra.mxu0 0.0
  %1094 = vmatpush.msra.mxu0 0.0
  %1095 = vmatpush.msra.mxu0 %v1075
  %1096 = vmatpush.msra.mxu0 %v1074
  %1097 = vmatpush.msra.mxu0 %v1073
  %1098 = vmatpush.msra.mxu0 %v1072
  %1099 = vmatmul.f32.gmra.mxu0 %v1081
  %v1100 = vpop.f32.mrf.mxu0
  %v1101 = vadd.f32 %v1078, %v1100
  %1102 = vdwg.mxu0
  %1103 = vst [vmem:[%s10] sm:$0xff] %v1101
  // Predicated region
  $region42: #{discriminator_no_share_s.1} parent=0 // pred_check
    _
  $region43: #{discriminator_no_share_s.1} parent=0 // pred_check_branch
    %1105 = sbr.rel (0) target = $region45
  $region44: #{discriminator_no_share_s.1} parent=0 // pred_region
    _
  $region45: #{discriminator_no_share_s.1} parent=0 // pred_fallthru
    _
  // Predicated region
  $region46: #{discriminator_no_share_s.1} parent=0 // pred_check
    _
  $region47: #{discriminator_no_share_s.1} parent=0 // pred_check_branch
    %1107 = sbr.rel (0) target = $region49
  $region48: #{discriminator_no_share_s.1} parent=0 // pred_region
    _
  $region49: #{discriminator_no_share_s.1} parent=0 // pred_fallthru
    _

</llo_original>
